<compile_context>
chip_gen: v6e
topology: v6e:2x2x1
jax: 0.10.0
libtpu: 0.0.40
codegen_flags: <defaults>
</compile_context>

<pallas_src>
import jax
import jax.numpy as jnp
from jax.experimental import pallas as pl
from jax.experimental.pallas import tpu as pltpu


# ----------------------------------------------------------------------------
# Fused kernel: projection + scores + softmax + context for one batch tile.
# ----------------------------------------------------------------------------
def _attn_kernel(h_ref, wt_ref, enc_ref, ctx_ref, attn_ref):
    # h_ref:    (bt, H)    hidden tile
    # wt_ref:   (H, H)     W.T (resident across grid steps)
    # enc_ref:  (bt, S, H) encoder outputs tile
    # ctx_ref:  (bt, H)    context output
    # attn_ref: (bt, S)    attention-weights output

    # Fused projection: q = hidden_tile @ W.T, f32 accumulation on the MXU.
    # This hides entirely under the (much larger) enc-tile DMA.
    q = jnp.dot(h_ref[...], wt_ref[...], preferred_element_type=jnp.float32)  # (bt, H)

    enc = enc_ref[...]  # (bt, S, H), native dtype

    # scores[b, s] = sum_h q[b, h] * enc[b, s, h]
    # VPU broadcast-multiply + lane reduce (avoids per-batch M=1 MXU matmuls).
    scores = jnp.sum(q[:, None, :] * enc, axis=-1)          # (bt, S), f32

    # Softmax over the sequence axis (exact divide so weights sum to 1).
    m = jnp.max(scores, axis=-1, keepdims=True)              # (bt, 1)
    p = jnp.exp(scores - m)                                   # (bt, S)
    l = jnp.sum(p, axis=-1, keepdims=True)                    # (bt, 1)
    attn = p / l                                              # (bt, S), f32

    # context[b, h] = sum_s attn[b, s] * enc[b, s, h]
    # Lane-broadcast of attn + sublane reduce over S; f32 accumulation.
    ctx = jnp.sum(attn[:, :, None] * enc, axis=1)             # (bt, H), f32

    ctx_ref[...] = ctx.astype(ctx_ref.dtype)
    attn_ref[...] = attn.astype(attn_ref.dtype)


# ----------------------------------------------------------------------------
# Tile sizing (generation-aware).
# ----------------------------------------------------------------------------
def _vmem_capacity_bytes():
    try:
        return int(pltpu.get_tpu_info().vmem_capacity_bytes)
    except Exception:
        return 64 * 1024 * 1024  # conservative fallback (v7x per-TC VMEM)


def _pick_tiles(B, S, H, isz, cap):
    """Pick the batch tile `bt` and a matching scoped-VMEM limit.

    Per-batch-row bytes, double-buffered by the pipeline:
      enc block S*H*isz (dominant), hidden/ctx 2*H*isz, attn S*isz;
    plus single-buffered f32 (bt,S,H) compute temporaries of the two
    broadcast-multiply/reduce contractions and the resident W.T block.
    """
    MiB = 1024 * 1024
    sub = 8 * max(1, 4 // isz)            # f32: 8 sublanes, bf16: 16, int8: 32
    ru = lambda x, m: -(-x // m) * m

    per_row = 2 * (S * H + 2 * H + S) * isz + 2 * S * H * 4
    fixed = 2 * H * H * isz + 2 * MiB     # resident W.T (double-buffered) + headroom

    if B <= sub:
        bt = B                            # block dim equals full batch dim (allowed)
    else:
        budget = max(cap * 2 // 5, 8 * MiB)     # ~40% of VMEM for pipeline blocks
        bt = (budget - fixed) // per_row if budget > fixed else 0
        bt = max(sub, (bt // sub) * sub)
        # Keep >= 2 grid steps so the "parallel" batch axis can be sharded
        # across both TensorCores on dual-TC parts (v7x); near-free elsewhere.
        bt = min(bt, ru(-(-B // 2), sub))
        bt = max(bt, sub)

    needed = bt * per_row + fixed
    # TODO(synk): tile the sequence axis (flash-style online softmax) when even
    # the minimum batch tile does not fit VMEM for very large S*H.
    vmem_limit = min(cap - 8 * MiB, max(needed, 32 * MiB))
    vmem_limit = max(vmem_limit, 16 * MiB)
    return int(bt), int(vmem_limit)


# ----------------------------------------------------------------------------
# Wrapper
# ----------------------------------------------------------------------------
def luong_attention(hidden, encoder_outputs, weight):
    """hidden: (B, H), encoder_outputs: (B, S, H), weight: (H, H) [out, in]."""
    B, H = hidden.shape
    _, S, _ = encoder_outputs.shape
    dtype = hidden.dtype
    isz = jnp.dtype(dtype).itemsize

    cap = _vmem_capacity_bytes()
    bt, vmem_limit = _pick_tiles(B, S, H, isz, cap)
    grid = (pl.cdiv(B, bt),)

    wt = weight.T  # one-time XLA transpose; no in-kernel transpose needed

    flops = 2 * B * H * H + 4 * B * S * H + 4 * B * S
    bytes_accessed = (B * H + H * H + B * S * H + B * H + B * S) * isz

    ctx, attn = pl.pallas_call(
        _attn_kernel,
        out_shape=(
            jax.ShapeDtypeStruct((B, H), dtype),
            jax.ShapeDtypeStruct((B, S), dtype),
        ),
        grid=grid,
        in_specs=[
            pl.BlockSpec((bt, H), lambda b: (b, 0)),      # hidden tile
            pl.BlockSpec((H, H), lambda b: (0, 0)),       # W.T (resident)
            pl.BlockSpec((bt, S, H), lambda b: (b, 0, 0)),  # encoder outputs tile
        ],
        out_specs=(
            pl.BlockSpec((bt, H), lambda b: (b, 0)),      # context
            pl.BlockSpec((bt, S), lambda b: (b, 0)),      # attention weights
        ),
        compiler_params=pltpu.CompilerParams(
            dimension_semantics=("parallel",),            # shardable across TCs
            vmem_limit_bytes=vmem_limit,
        ),
        cost_estimate=pl.CostEstimate(
            flops=flops, transcendentals=B * S, bytes_accessed=bytes_accessed
        ),
    )(hidden, wt, encoder_outputs)

    return ctx, attn


def luong_attention_ref(hidden, encoder_outputs, weight):
    """Pure-JAX reference mirroring the PyTorch forward."""
    q = hidden @ weight.T                                   # (B, H)
    scores = jnp.einsum("bsh,bh->bs", encoder_outputs, q)   # (B, S)
    attn = jax.nn.softmax(scores, axis=-1)                  # (B, S)
    ctx = jnp.einsum("bs,bsh->bh", attn, encoder_outputs)   # (B, H)
    return ctx, attn


if __name__ == "__main__":
    B, S, H = 2, 8, 32

    key = jax.random.PRNGKey(0)
    k_w, k_h, k_e = jax.random.split(key, 3)

    # nn.Linear(hidden_size, hidden_size, bias=False): weight is (out, in).
    weight = jax.random.normal(k_w, (H, H), dtype=jnp.float32) * (1.0 / jnp.sqrt(H))
    hidden = jax.random.normal(k_h, (B, H), dtype=jnp.float32)
    encoder_outputs = jax.random.normal(k_e, (B, S, H), dtype=jnp.float32)

    ctx, attn = luong_attention(hidden, encoder_outputs, weight)
    jax.block_until_ready((ctx, attn))

    ctx_ref, attn_ref = luong_attention_ref(hidden, encoder_outputs, weight)
    assert ctx.shape == (B, H) and attn.shape == (B, S)
    assert jnp.allclose(ctx, ctx_ref, atol=1e-4, rtol=1e-4)
    assert jnp.allclose(attn, attn_ref, atol=1e-4, rtol=1e-4)
    assert jnp.allclose(jnp.sum(attn, axis=-1), jnp.ones((B,)), atol=1e-5)

    print("KERNEL_OK")
</pallas_src>

<mosaic_0001>
module attributes {stable_mosaic.version = 11 : i64} {
  func.func @_attn_kernel(%arg0: i32, %arg1: memref<2x32xf32, #tpu.memory_space<vmem>>, %arg2: memref<32x32xf32, #tpu.memory_space<vmem>>, %arg3: memref<2x8x32xf32, #tpu.memory_space<vmem>>, %arg4: memref<2x32xf32, #tpu.memory_space<vmem>>, %arg5: memref<2x8xf32, #tpu.memory_space<vmem>>) attributes {dimension_semantics = [#tpu.dimension_semantics<parallel>], iteration_bounds = array<i64: 1>, scalar_prefetch = 0 : i64, scratch_operands = 0 : i64, tpu.core_type = #tpu.core_type<tc>, window_params = [{transform_indices = @transform_0, window_bounds = array<i64: 2, 32>}, {pipeline_mode = #tpu.pipeline_mode<synchronous>, transform_indices = @transform_1, window_bounds = array<i64: 32, 32>}, {transform_indices = @transform_2, window_bounds = array<i64: 2, 8, 32>}, {transform_indices = @transform_3, window_bounds = array<i64: 2, 32>}, {transform_indices = @transform_4, window_bounds = array<i64: 2, 8>}]} {
    %c0 = arith.constant 0 : index
    %c0_0 = arith.constant 0 : index
    %0 = vector.load %arg1[%c0, %c0_0] : memref<2x32xf32, #tpu.memory_space<vmem>>, vector<2x32xf32>
    %c0_1 = arith.constant 0 : index
    %c0_2 = arith.constant 0 : index
    %1 = vector.load %arg2[%c0_1, %c0_2] : memref<32x32xf32, #tpu.memory_space<vmem>>, vector<32x32xf32>
    %cst = arith.constant dense<0.000000e+00> : vector<2x32xf32>
    %2 = tpu.matmul %0, %1, %cst {dimension_numbers = #tpu.dot_dimension_numbers<[1], [0], [0], [1], [0, 0, 1, 1], [], []>} : vector<2x32xf32>, vector<32x32xf32>, vector<2x32xf32> -> vector<2x32xf32>
    %c0_3 = arith.constant 0 : index
    %c0_4 = arith.constant 0 : index
    %c0_5 = arith.constant 0 : index
    %3 = vector.load %arg3[%c0_3, %c0_4, %c0_5] : memref<2x8x32xf32, #tpu.memory_space<vmem>>, vector<2x8x32xf32>
    %4 = vector.shape_cast %2 : vector<2x32xf32> to vector<2x1x32xf32>
    %5 = vector.broadcast %4 : vector<2x1x32xf32> to vector<2x8x32xf32>
    %6 = arith.mulf %5, %3 : vector<2x8x32xf32>
    %cst_6 = arith.constant dense<0.000000e+00> : vector<2x8xf32>
    %7 = vector.multi_reduction <add>, %6, %cst_6 [2] : vector<2x8x32xf32> to vector<2x8xf32>
    %cst_7 = arith.constant dense<0xFF800000> : vector<2xf32>
    %8 = vector.multi_reduction <maximumf>, %7, %cst_7 [1] : vector<2x8xf32> to vector<2xf32>
    %9 = vector.shape_cast %8 : vector<2xf32> to vector<2x1xf32>
    %10 = vector.broadcast %9 : vector<2x1xf32> to vector<2x8xf32>
    %11 = arith.subf %7, %10 : vector<2x8xf32>
    %12 = math.exp %11 : vector<2x8xf32>
    %cst_8 = arith.constant dense<0.000000e+00> : vector<2xf32>
    %13 = vector.multi_reduction <add>, %12, %cst_8 [1] : vector<2x8xf32> to vector<2xf32>
    %14 = vector.shape_cast %13 : vector<2xf32> to vector<2x1xf32>
    %15 = vector.broadcast %14 : vector<2x1xf32> to vector<2x8xf32>
    %16 = arith.divf %12, %15 : vector<2x8xf32>
    %17 = vector.shape_cast %16 : vector<2x8xf32> to vector<2x8x1xf32>
    %18 = vector.broadcast %17 : vector<2x8x1xf32> to vector<2x8x32xf32>
    %19 = arith.mulf %18, %3 : vector<2x8x32xf32>
    %cst_9 = arith.constant dense<0.000000e+00> : vector<2x32xf32>
    %20 = vector.multi_reduction <add>, %19, %cst_9 [1] : vector<2x8x32xf32> to vector<2x32xf32>
    %c0_10 = arith.constant 0 : index
    %c0_11 = arith.constant 0 : index
    %21 = vector.load %arg4[%c0_10, %c0_11] : memref<2x32xf32, #tpu.memory_space<vmem>>, vector<2x32xf32>
    tpu.vector_store %arg4[%c0_10, %c0_11], %20 {strides = array<i32>} : memref<2x32xf32, #tpu.memory_space<vmem>>, vector<2x32xf32>,
    %c0_12 = arith.constant 0 : index
    %c0_13 = arith.constant 0 : index
    %22 = vector.load %arg5[%c0_12, %c0_13] : memref<2x8xf32, #tpu.memory_space<vmem>>, vector<2x8xf32>
    tpu.vector_store %arg5[%c0_12, %c0_13], %16 {strides = array<i32>} : memref<2x8xf32, #tpu.memory_space<vmem>>, vector<2x8xf32>,
    return
  }
  func.func @transform_0(%arg0: i32) -> (i32, i32) {
    %c0_i32 = arith.constant 0 : i32
    %c0_i32_0 = arith.constant 0 : i32
    return %arg0, %c0_i32 : i32, i32
  }
  func.func @transform_1(%arg0: i32) -> (i32, i32) {
    %c0_i32 = arith.constant 0 : i32
    %c0_i32_0 = arith.constant 0 : i32
    %c0_i32_1 = arith.constant 0 : i32
    return %c0_i32, %c0_i32_0 : i32, i32
  }
  func.func @transform_2(%arg0: i32) -> (i32, i32, i32) {
    %c0_i32 = arith.constant 0 : i32
    %c0_i32_0 = arith.constant 0 : i32
    %c0_i32_1 = arith.constant 0 : i32
    return %arg0, %c0_i32, %c0_i32_0 : i32, i32, i32
  }
  func.func @transform_3(%arg0: i32) -> (i32, i32) {
    %c0_i32 = arith.constant 0 : i32
    %c0_i32_0 = arith.constant 0 : i32
    return %arg0, %c0_i32 : i32, i32
  }
  func.func @transform_4(%arg0: i32) -> (i32, i32) {
    %c0_i32 = arith.constant 0 : i32
    %c0_i32_0 = arith.constant 0 : i32
    return %arg0, %c0_i32 : i32, i32
  }
}

</mosaic_0001>

<llo_original>
// kernel: tpu_custom_call.1
$region0: #{tpu_custom_call.1}
  #allocation0 [shape = 'u32[]', space=smem, size = 0x4, offset = 0x4, fixed_abs, tag = 'smem constant byte address 0x4 - core index']
  #allocation1 [shape = 'u32[144,128]{1,0:T(1,128)}', space=vmem, size = 0x12000, scoped, tag = 'internal scratch']
  %s0 = inlined_call_operand.hbm [shape: f32[2,32], index: 0, kind: input, shape index: {}]
  %s1 = inlined_call_operand.hbm [shape: f32[32,32], index: 1, kind: input, shape index: {}]
  %s2 = inlined_call_operand.hbm [shape: f32[2,8,32], index: 2, kind: input, shape index: {}]
  %s3 = inlined_call_operand.hbm [shape: f32[2,32], index: 3, kind: output, shape index: {0}]
  %s4 = inlined_call_operand.hbm [shape: f32[2,8], index: 4, kind: output, shape index: {1}]
  %5 = xla_tuple %s3, %s4
  %s6 = sld [smem:[#allocation0]]
  $region42: #{tpu_custom_call.1} parent=0
    _
  %s8 = ssub.s32 1, %s6
  %s9 = scalar_select 0, %s8, %s6
  $region1: #{tpu_custom_call.1} parent=0
    #allocation2 [shape = 'u8[1024]{0}', space=vmem, size = 0x400, scoped, tag = 'input window, operand 0, single buffered']
    #allocation3 [shape = 's32[1]{0}', space=sflag, size = 0x4, scoped, tag = 'scoped memory for tpu_custom_call.1']
    #allocation4 [shape = 's32[1]{0}', space=sflag, size = 0x4, scoped, tag = 'scoped memory for tpu_custom_call.1']
    #allocation5 [shape = 'u8[16384]{0}', space=vmem, size = 0x4000, scoped, tag = 'input window, operand 1, single buffered']
    #allocation6 [shape = 's32[1]{0}', space=sflag, size = 0x4, scoped, tag = 'scoped memory for tpu_custom_call.1']
    #allocation7 [shape = 'u8[8192]{0}', space=vmem, size = 0x2000, scoped, tag = 'input window, operand 2, single buffered']
    #allocation8 [shape = 'u8[1024]{0}', space=vmem, size = 0x400, scoped, tag = 'output window, operand 0, single buffered']
    #allocation9 [shape = 'u8[1024]{0}', space=vmem, size = 0x400, scoped, tag = 'output window, operand 1, single buffered']
    #allocation10 [shape = 's32[1]{0}', space=sflag, size = 0x4, scoped, tag = 'scoped memory for tpu_custom_call.1']
    %10 = vsyncpa [#allocation3], 0
    %11 = vsyncpa [#allocation6], 0
    %12 = vsyncpa [#allocation4], 0
    %13 = vsyncpa [#allocation10], 0
    // Predicated region
    $region2: #{tpu_custom_call.1} parent=1 // pred_check
      _
    $region3: #{tpu_custom_call.1} parent=1 // pred_check_branch
      %15 = sbr.rel (0) target = $region5
    $region4: #{tpu_custom_call.1} parent=1 // pred_region
      %s17 = ssub.s32 32, 32
      %18 = vsyncadd [#allocation3], %s17
      %s20 = sshll.u32 [#allocation2], 4
      %s21 = int_to_ptr.vmem [resolvable:$true] %s20
      %23 = dma.hbm_to_vmem [thread:$0]  %s0, 32, %s21, [#allocation3]
    $region5: #{tpu_custom_call.1} parent=1 // pred_fallthru
      _
    // Predicated region
    $region6: #{tpu_custom_call.1} parent=1 // pred_check
      _
    $region7: #{tpu_custom_call.1} parent=1 // pred_check_branch
      %25 = sbr.rel (0) target = $region9
    $region8: #{tpu_custom_call.1} parent=1 // pred_region
      %s27 = ssub.s32 512, 512
      %28 = vsyncadd [#allocation6], %s27
      %s29 = sshll.u32 [#allocation5], 4
      %s30 = int_to_ptr.vmem [resolvable:$true] %s29
      %35 = dma.hbm_to_vmem [thread:$0]  %s1, 512, %s30, [#allocation6], 128, 128, 8
    $region9: #{tpu_custom_call.1} parent=1 // pred_fallthru
      _
    // Predicated region
    $region10: #{tpu_custom_call.1} parent=1 // pred_check
      _
    $region11: #{tpu_custom_call.1} parent=1 // pred_check_branch
      %37 = sbr.rel (0) target = $region13
    $region12: #{tpu_custom_call.1} parent=1 // pred_region
      %s39 = ssub.s32 256, 256
      %40 = vsyncadd [#allocation6], %s39
      %s41 = sshll.u32 [#allocation7], 4
      %s42 = int_to_ptr.vmem [resolvable:$true] %s41
      %47 = dma.hbm_to_vmem [thread:$0]  %s2, 256, %s42, [#allocation6], 128, 128, 8
    $region13: #{tpu_custom_call.1} parent=1 // pred_fallthru
      _
    // Predicated region
    $region14: #{tpu_custom_call.1} parent=1 // pred_check
      _
    $region15: #{tpu_custom_call.1} parent=1 // pred_check_branch
      %49 = sbr.rel (0) target = $region17
    $region16: #{tpu_custom_call.1} parent=1 // pred_region
      %50 = dma.done [#allocation3], 32
    $region17: #{tpu_custom_call.1} parent=1 // pred_fallthru
      _
    // Predicated region
    $region18: #{tpu_custom_call.1} parent=1 // pred_check
      _
    $region19: #{tpu_custom_call.1} parent=1 // pred_check_branch
      %52 = sbr.rel (0) target = $region21
    $region20: #{tpu_custom_call.1} parent=1 // pred_region
      %53 = dma.done [#allocation6], 512
    $region21: #{tpu_custom_call.1} parent=1 // pred_fallthru
      _
    // Predicated region
    $region22: #{tpu_custom_call.1} parent=1 // pred_check
      _
    $region23: #{tpu_custom_call.1} parent=1 // pred_check_branch
      %55 = sbr.rel (0) target = $region25
    $region24: #{tpu_custom_call.1} parent=1 // pred_region
      %56 = dma.done [#allocation6], 256
    $region25: #{tpu_custom_call.1} parent=1 // pred_fallthru
      _
    %v57 = vld [vmem:[#allocation2] sm:$0x3]
    %v58 = vld [vmem:[#allocation5] sm:$0xff]
    %v59 = vld [vmem:[#allocation5 + $0x8] sm:$0xff]
    %v60 = vld [vmem:[#allocation5 + $0x10] sm:$0xff]
    %v61 = vld [vmem:[#allocation5 + $0x18] sm:$0xff]
    %vm62 = vcmask 261120
    %v64 = vsel %vm62, %v57, 0
    %66 = vmatprep.subr.mxu0 0.0
    %67 = vmatpush1.msra.mxu0 0.0
    %68 = vmatprep.subr.mxu0 0.0
    %69 = vmatpush1.msra.mxu0 0.0
    %70 = vmatprep.subr.mxu0 0.0
    %71 = vmatpush1.msra.mxu0 0.0
    %72 = vmatprep.subr.mxu0 0.0
    %73 = vmatpush1.msra.mxu0 0.0
    %74 = vmatprep.subr.mxu0 0.0
    %75 = vmatpush1.msra.mxu0 0.0
    %76 = vmatprep.subr.mxu0 0.0
    %77 = vmatpush1.msra.mxu0 0.0
    %78 = vmatprep.subr.mxu0 0.0
    %79 = vmatpush1.msra.mxu0 0.0
    %80 = vmatprep.subr.mxu0 0.0
    %81 = vmatpush1.msra.mxu0 0.0
    %82 = vmatprep.subr.mxu0 0.0
    %83 = vmatpush1.msra.mxu0 0.0
    %84 = vmatprep.subr.mxu0 0.0
    %85 = vmatpush1.msra.mxu0 0.0
    %86 = vmatprep.subr.mxu0 0.0
    %87 = vmatpush1.msra.mxu0 0.0
    %88 = vmatprep.subr.mxu0 0.0
    %89 = vmatpush1.msra.mxu0 0.0
    %90 = vmatprep.subr.mxu0 0.0
    %91 = vmatpush1.msra.mxu0 %v61
    %92 = vmatprep.subr.mxu0 0.0
    %93 = vmatpush1.msra.mxu0 %v60
    %94 = vmatprep.subr.mxu0 0.0
    %95 = vmatpush1.msra.mxu0 %v59
    %96 = vmatprep.subr.mxu0 0.0
    %97 = vmatpush1.msra.mxu0 %v58
    %98 = vmatprep.subr.mxu0 0.0
    %99 = vmatpush2.msra.mxu0 0.0
    %100 = vmatprep.subr.mxu0 0.0
    %101 = vmatpush2.msra.mxu0 0.0
    %102 = vmatprep.subr.mxu0 0.0
    %103 = vmatpush2.msra.mxu0 0.0
    %104 = vmatprep.subr.mxu0 0.0
    %105 = vmatpush2.msra.mxu0 0.0
    %106 = vmatprep.subr.mxu0 0.0
    %107 = vmatpush2.msra.mxu0 0.0
    %108 = vmatprep.subr.mxu0 0.0
    %109 = vmatpush2.msra.mxu0 0.0
    %110 = vmatprep.subr.mxu0 0.0
    %111 = vmatpush2.msra.mxu0 0.0
    %112 = vmatprep.subr.mxu0 0.0
    %113 = vmatpush2.msra.mxu0 0.0
    %114 = vmatprep.subr.mxu0 0.0
    %115 = vmatpush2.msra.mxu0 0.0
    %116 = vmatprep.subr.mxu0 0.0
    %117 = vmatpush2.msra.mxu0 0.0
    %118 = vmatprep.subr.mxu0 0.0
    %119 = vmatpush2.msra.mxu0 0.0
    %120 = vmatprep.subr.mxu0 0.0
    %121 = vmatpush2.msra.mxu0 0.0
    %122 = vmatprep.subr.mxu0 0.0
    %123 = vmatpush2.msra.mxu0 0.0
    %124 = vmatprep.subr.mxu0 0.0
    %125 = vmatpush2.msra.mxu0 0.0
    %126 = vmatprep.subr.mxu0 0.0
    %127 = vmatpush2.msra.mxu0 0.0
    %128 = vmatprep.subr.mxu0 0.0
    %129 = vmatpush2.msra.mxu0 0.0
    %130 = vmatprep.mubr.f32.mxu0 0.0
    %131 = vmatmul.mubr.f32.gmra.mxu0 %v64
    %v132 = vpop.f32.mrf.mxu0
    %v133 = vadd.f32 0.0, %v132
    %v134 = vpop.f32.mrf.mxu0
    %135 = vdwg.mxu0
    %v136 = vld [vmem:[#allocation7] sm:$0xff]
    %v137 = vld [vmem:[#allocation7 + $0x8] sm:$0xff]
    %v140 = vunpack.c.l.s4 1966171168
    %v141 = vunpack.c.0.s8 %v140
    %v142 = vlaneseq
    %v143 = vshrl.u32 %v142, 7
    %v144 = vsub.s32 %v141, %v143
    %v145 = vrot.slane %v133, %v144
    %v146 = vcombine.high %v145, %v145
    %v148 = vunpack.c.l.s4 1966171168
    %v149 = vunpack.c.0.s8 %v148
    %v150 = vlaneseq
    %v151 = vshrl.u32 %v150, 7
    %v152 = vsub.s32 %v149, %v151
    %v153 = vrot.slane %v145, %v152
    %v155 = vunpack.c.l.s4 1966171168
    %v156 = vunpack.c.0.s8 %v155
    %v157 = vlaneseq
    %v158 = vshrl.u32 %v157, 7
    %v159 = vsub.s32 %v156, %v158
    %v160 = vrot.slane %v146, %v159
    %v161 = vlaneseq
    %v162 = vshrl.u32 %v161, 7
    %v163 = vsub.s32 0, %v162
    %v164 = vrot.slane %v153, %v163
    %v165 = vlaneseq
    %v166 = vshrl.u32 %v165, 7
    %v167 = vsub.s32 0, %v166
    %v168 = vrot.slane %v160, %v167
    %v171 = vmul.f32 %v164, %v136
    %v172 = vmul.f32 %v168, %v137
    %v173 = vsel %vm62, %v171, 0.0
    %174 = vadd.xlane.f32.xlu0 %v173
    %v175 = vpop.xlane.xlu0 %174
    %v176 = vsel %vm62, %v172, 0.0
    %177 = vadd.xlane.f32.xlu0 %v176
    %v178 = vpop.xlane.xlu0 %177
    %v181 = vlaneseq
    %v182 = vand.u32 %v181, 127
    %v183 = vlaneseq
    %v184 = vshrl.u32 %v183, 7
    %v185 = vsub.s32 %v182, %v184
    %v186 = vrot.slane %v175, %v185
    %v187 = vlaneseq
    %v188 = vshrl.u32 %v187, 7
    %v189 = vsub.s32 %v182, %v188
    %v190 = vrot.slane %v178, %v189
    %vm191 = vcmask 1041409
    %v192 = vsel %vm191, %v190, %v186
    %vm194 = vcmask 58368
    %v195 = vsel %vm194, %v192, -inf
    %196 = vmax.xlane.f32.xlu0 %v195
    %v197 = vpop.xlane.xlu0 %196
    %v199 = vlaneseq
    %v200 = vshrl.u32 %v199, 7
    %v201 = vsub.s32 0, %v200
    %v202 = vrot.slane %v197, %v201
    %v203 = vlaneseq
    %v204 = vshrl.u32 %v203, 7
    %v205 = vsub.s32 1, %v204
    %v206 = vrot.slane %v197, %v205
    %v209 = vsub.f32 %v175, %v202
    %v210 = vsub.f32 %v178, %v206
    %v211 = vmul.f32 %v209, 1.442695
    %v212 = vpow.pop %v211
    %v213 = vmul.f32 %v210, 1.442695
    %v214 = vpow.pop %v213
    %217 = vset.pattern.permute.xlu0 0
    %218 = vperm.xlu0 %217, %v212
    %v219 = vpop.permute.xlu0 %218
    %220 = vset.pattern.permute.xlu0 0
    %221 = vperm.xlu0 %220, %v214
    %v222 = vpop.permute.xlu0 %221
    %v223 = vlaneseq
    %v224 = vshrl.u32 %v223, 7
    %v225 = vsub.s32 %v182, %v224
    %v226 = vrot.slane %v219, %v225
    %v227 = vlaneseq
    %v228 = vshrl.u32 %v227, 7
    %v229 = vsub.s32 %v182, %v228
    %v230 = vrot.slane %v222, %v229
    %v231 = vsel %vm191, %v230, %v226
    %v233 = vsel %vm194, %v231, 0.0
    %234 = vadd.xlane.f32.xlu0 %v233
    %v235 = vpop.xlane.xlu0 %234
    %v237 = vlaneseq
    %v238 = vshrl.u32 %v237, 7
    %v239 = vsub.s32 0, %v238
    %v240 = vrot.slane %v235, %v239
    %v241 = vlaneseq
    %v242 = vshrl.u32 %v241, 7
    %v243 = vsub.s32 1, %v242
    %v244 = vrot.slane %v235, %v243
    %v247 = vrcp.pop %v240
    %v248 = vmul.f32 %v212, %v247
    %v249 = vrcp.pop %v244
    %v250 = vmul.f32 %v214, %v249
    %252 = vset.pattern.permute.xlu0 0
    %253 = vperm.xlu0 %252, %v248
    %v254 = vpop.permute.xlu0 %253
    %257 = vset.pattern.permute.xlu0 0
    %258 = vperm.xlu0 %257, %v250
    %v259 = vpop.permute.xlu0 %258
    %v261 = vmul.f32 %v254, %v136
    %v262 = vmul.f32 %v259, %v137
    %v263 = vsel %vm62, %v261, 0.0
    %v264 = vrot.slane %v263, 4
    %v265 = vadd.f32 %v263, %v264
    %v266 = vrot.slane %v265, 2
    %v267 = vadd.f32 %v265, %v266
    %v268 = vrot.slane %v267, 1
    %v269 = vadd.f32 %v267, %v268
    %v270 = vsel %vm62, %v262, 0.0
    %v271 = vrot.slane %v270, 4
    %v272 = vadd.f32 %v270, %v271
    %v273 = vrot.slane %v272, 2
    %v274 = vadd.f32 %v272, %v273
    %v275 = vrot.slane %v274, 1
    %v276 = vadd.f32 %v274, %v275
    %v279 = vsel %vm191, %v276, %v269
    %vm281 = vcmask 254976
    %282 = vst.msk [vmem:[#allocation8] sm:$0x3] %vm281, %v279
    %v283 = vlaneseq
    %v284 = vshrl.u32 %v283, 7
    %v285 = vsub.s32 %v182, %v284
    %v286 = vrot.slane %v254, %v285
    %v287 = vlaneseq
    %v288 = vshrl.u32 %v287, 7
    %v289 = vsub.s32 %v182, %v288
    %v290 = vrot.slane %v259, %v289
    %v291 = vsel %vm191, %v290, %v286
    %293 = vst.msk [vmem:[#allocation9] sm:$0x3] %vm194, %v291
    // Predicated region
    $region26: #{tpu_custom_call.1} parent=1 // pred_check
      _
    $region27: #{tpu_custom_call.1} parent=1 // pred_check_branch
      %295 = sbr.rel (0) target = $region29
    $region28: #{tpu_custom_call.1} parent=1 // pred_region
      %s297 = ssub.s32 32, 32
      %298 = vsyncadd [#allocation4], %s297
      %s300 = sshll.u32 [#allocation8], 4
      %s301 = int_to_ptr.vmem [resolvable:$true] %s300
      %303 = dma.vmem_to_hbm [thread:$0]  %s301, 32, %s3, [#allocation4]
    $region29: #{tpu_custom_call.1} parent=1 // pred_fallthru
      _
    // Predicated region
    $region30: #{tpu_custom_call.1} parent=1 // pred_check
      _
    $region31: #{tpu_custom_call.1} parent=1 // pred_check_branch
      %305 = sbr.rel (0) target = $region33
    $region32: #{tpu_custom_call.1} parent=1 // pred_region
      %s307 = ssub.s32 32, 32
      %308 = vsyncadd [#allocation10], %s307
      %s310 = sshll.u32 [#allocation9], 4
      %s311 = int_to_ptr.vmem [resolvable:$true] %s310
      %313 = dma.vmem_to_hbm [thread:$0]  %s311, 32, %s4, [#allocation10]
    $region33: #{tpu_custom_call.1} parent=1 // pred_fallthru
      _
    // Predicated region
    $region34: #{tpu_custom_call.1} parent=1 // pred_check
      _
    $region35: #{tpu_custom_call.1} parent=1 // pred_check_branch
      %315 = sbr.rel (0) target = $region37
    $region36: #{tpu_custom_call.1} parent=1 // pred_region
      %316 = dma.done [#allocation4], 32
    $region37: #{tpu_custom_call.1} parent=1 // pred_fallthru
      _
    // Predicated region
    $region38: #{tpu_custom_call.1} parent=1 // pred_check
      _
    $region39: #{tpu_custom_call.1} parent=1 // pred_check_branch
      %318 = sbr.rel (0) target = $region41
    $region40: #{tpu_custom_call.1} parent=1 // pred_region
      %319 = dma.done [#allocation10], 32
    $region41: #{tpu_custom_call.1} parent=1 // pred_fallthru
      _
    %320 = vsyncpa [#allocation3], 1
    %321 = vsyncpa [#allocation6], 1
    %322 = vsyncpa [#allocation4], 1
    %323 = vsyncpa [#allocation10], 1

</llo_original>
